<compile_context>
chip_gen: v7x
topology: tpu7x:2x2x1
jax: 0.10.0
libtpu: 0.0.40
codegen_flags: <defaults>
</compile_context>

<pallas_src>
import jax
import jax.numpy as jnp
from jax.experimental import pallas as pl
from jax.experimental.pallas import tpu as pltpu


_LANE = 128            # feature dims padded to a multiple of the vreg lane width
_SUBLANE_BF16 = 16     # bf16 packs 16 rows per vreg -> batch tiles aligned to 16
_MAX_BATCH_TILE = 2048


def _round_up(n, m):
    return ((n + m - 1) // m) * m


# ----------------------------------------------------------------------------- hardware probes
_NUM_TC = None


def _num_tensorcores():
    """Best-effort TensorCores-per-chip (2 on v7x, 1 on v5e/v6e). Safe fallback = 1."""
    global _NUM_TC
    if _NUM_TC is not None:
        return _NUM_TC
    n = 1
    try:
        kind = jax.devices()[0].device_kind.lower()
        if "v7" in kind or "7x" in kind:
            n = 2
    except Exception:
        pass
    if n == 1:
        try:
            info = pltpu.get_tpu_info()
            for attr in ("num_cores", "core_count", "num_tensorcores", "tensorcore_count"):
                v = getattr(info, attr, None)
                if v:
                    n = max(n, int(v))
                    break
        except Exception:
            pass
    _NUM_TC = n
    return n


_BUFFERED_OK = None


def _buffered_supported():
    """One-time cached probe: does this JAX/Mosaic accept pipeline_mode=pl.Buffered(1)
    on a squeezed-leading-dim, constant-index BlockSpec (the exact pattern we use)?"""
    global _BUFFERED_OK
    if _BUFFERED_OK is not None:
        return _BUFFERED_OK
    if not hasattr(pl, "Buffered"):
        _BUFFERED_OK = False
        return False
    try:
        spec = pl.BlockSpec((None, 16, 128), lambda i: (0, 0, 0),
                            pipeline_mode=pl.Buffered(1))

        def _probe(a_ref, o_ref):
            o_ref[...] = a_ref[...] * 2.0

        fn = pl.pallas_call(
            _probe,
            out_shape=jax.ShapeDtypeStruct((16, 128), jnp.float32),
            grid=(1,),
            in_specs=[spec],
            out_specs=pl.BlockSpec((16, 128), lambda i: (0, 0)),
        )
        jax.block_until_ready(fn(jnp.zeros((1, 16, 128), jnp.float32)))
        _BUFFERED_OK = True
    except Exception:
        # Probe-only fallback; errors in the real kernel are never swallowed here.
        _BUFFERED_OK = False
    return _BUFFERED_OK


# ----------------------------------------------------------------------------- kernel body
def _make_mlp_kernel(num_layers):
    """Fused MLP kernel. Ref order: x, (w0, b0), ..., (wL-1, bL-1), out."""

    def kernel(*refs):
        x_ref = refs[0]
        o_ref = refs[-1]
        h = x_ref[...]                                     # bf16 activations [tb, din_p]
        for layer in range(num_layers):
            w = refs[1 + 2 * layer][...]                   # bf16 [din_p, dout_p]
            b = refs[2 + 2 * layer][...]                   # f32  [1, dout_p]
            acc = jnp.dot(h, w, preferred_element_type=jnp.float32) + b
            if layer < num_layers - 1:
                acc = jnp.maximum(acc, 0.0)                # ReLU; Dropout(0.1) identity in eval
                h = acc.astype(jnp.bfloat16)               # bf16 feed into next MXU pass
            else:
                h = acc
        o_ref[...] = h.astype(o_ref.dtype)

    return kernel


# ----------------------------------------------------------------------------- tiling heuristic
def _choose_batch_tiling(batch, batch_tile, num_cores):
    """Balanced batch tiles, 16-sublane aligned. Only split into multiple steps when either
    the batch exceeds MAX_TILE or there are >=2 TensorCores (v7x) and enough work to share."""
    sub = _SUBLANE_BF16
    batch_aligned = _round_up(max(batch, sub), sub)
    if batch_tile is not None:
        tb = max(sub, _round_up(min(batch_tile, batch_aligned), sub))
        num_steps = pl.cdiv(batch_aligned, tb)
    else:
        num_steps = pl.cdiv(batch_aligned, _MAX_BATCH_TILE)
        if (num_cores >= 2 and num_steps < num_cores
                and batch_aligned > num_cores * sub):
            num_steps = num_cores
        tb = _round_up(pl.cdiv(batch_aligned, num_steps), sub)
        num_steps = pl.cdiv(batch_aligned, tb)
    batch_padded = num_steps * tb
    return tb, batch_padded, num_steps


# ----------------------------------------------------------------------------- forward (task-stacked core)
def _forward_tasks(x, params, *, batch_tile, trim_output):
    """x: [T, batch, input_dim] f32; params: list of (w [T,d_in,d_out], b [T,1,d_out])."""
    num_tasks, batch, input_dim = x.shape
    num_layers = len(params)
    output_dim = params[-1][0].shape[-1]

    dims = [input_dim] + [w.shape[-1] for (w, _) in params]
    dims_pad = [_round_up(d, _LANE) for d in dims]

    num_cores = _num_tensorcores()
    tb, batch_padded, num_steps = _choose_batch_tiling(batch, batch_tile, num_cores)

    # ---- pad & cast operands (wrapper-side layout plumbing) ------------------
    x_p = jnp.pad(x, ((0, 0),
                      (0, batch_padded - batch),
                      (0, dims_pad[0] - input_dim))).astype(jnp.bfloat16)

    flat_params = []
    for li, (w, b) in enumerate(params):
        d_in, d_out = w.shape[-2], w.shape[-1]
        w_p = jnp.pad(w.astype(jnp.bfloat16),
                      ((0, 0), (0, dims_pad[li] - d_in), (0, dims_pad[li + 1] - d_out)))
        b_p = jnp.pad(b.astype(jnp.float32),
                      ((0, 0), (0, 0), (0, dims_pad[li + 1] - d_out)))
        flat_params.extend([w_p, b_p])

    use_buffered1 = (num_tasks == 1) and _buffered_supported()

    # ---- computed VMEM budget (keeps larger tiles safe on v7x's 64 MiB) ------
    x_tile_bytes = tb * dims_pad[0] * 2
    out_tile_bytes = tb * dims_pad[-1] * 4
    weight_bytes = sum(dims_pad[i] * dims_pad[i + 1] * 2 + dims_pad[i + 1] * 4
                       for i in range(num_layers))
    act_bytes = 2 * tb * max(dims_pad) * 4                 # in-kernel f32 intermediates
    w_bufs = 1 if use_buffered1 else 2
    working = 2 * x_tile_bytes + 2 * out_tile_bytes + w_bufs * weight_bytes + act_bytes
    vmem_limit = int(min(max(2 * working + (4 << 20), 16 << 20), 32 << 20))

    # ---- cost estimate (helps XLA schedule this tiny custom call) ------------
    flops = 2 * num_tasks * batch_padded * sum(dims_pad[i] * dims_pad[i + 1]
                                               for i in range(num_layers))
    bytes_accessed = (int(x_p.size) * 2
                      + sum(int(p.size) * p.dtype.itemsize for p in flat_params)
                      + num_tasks * batch_padded * dims_pad[-1] * 4)
    cost = pl.CostEstimate(flops=int(flops), transcendentals=0,
                           bytes_accessed=int(bytes_accessed))

    # ---- BlockSpecs -----------------------------------------------------------
    w_kwargs = {"pipeline_mode": pl.Buffered(1)} if use_buffered1 else {}
    in_specs = [pl.BlockSpec((None, tb, dims_pad[0]), lambda t, i: (t, i, 0))]
    for li in range(num_layers):
        din_p, dout_p = dims_pad[li], dims_pad[li + 1]
        in_specs.append(pl.BlockSpec((None, din_p, dout_p), lambda t, i: (t, 0, 0), **w_kwargs))
        in_specs.append(pl.BlockSpec((None, 1, dout_p), lambda t, i: (t, 0, 0), **w_kwargs))
    out_spec = pl.BlockSpec((None, tb, dims_pad[-1]), lambda t, i: (t, i, 0))

    out_p = pl.pallas_call(
        _make_mlp_kernel(num_layers),
        out_shape=jax.ShapeDtypeStruct((num_tasks, batch_padded, dims_pad[-1]), jnp.float32),
        grid_spec=pltpu.PrefetchScalarGridSpec(
            num_scalar_prefetch=0,
            grid=(num_tasks, num_steps),
            in_specs=in_specs,
            out_specs=out_spec,
        ),
        compiler_params=pltpu.CompilerParams(
            dimension_semantics=("parallel", "parallel"),
            vmem_limit_bytes=vmem_limit,
        ),
        cost_estimate=cost,
    )(x_p, *flat_params)

    if trim_output:
        # Extra XLA copy; fused consumers can pass trim_output=False and keep the padded slab.
        return out_p[:, :batch, :output_dim]
    return out_p


# ----------------------------------------------------------------------------- public wrapper
def meta_learning_forward(x, params, *, batch_tile=None, trim_output=True):
    """MetaLearningModel forward as one fused Pallas kernel.

    Single-task:  x [batch, input_dim];      params (w [d_in,d_out], b [1,d_out] or [d_out]).
    Task-stacked: x [T, batch, input_dim];   params (w [T,d_in,d_out], b [T,1,d_out] or [T,d_out]).
    Returns f32 [batch, output_dim] (or [T, batch, output_dim]); if trim_output=False the
    lane/batch-padded buffer is returned instead (avoids the post-call slice copy).
    """
    single_task = (x.ndim == 2)
    if single_task:
        x_t = x[None]
        params_t = [(w[None], jnp.reshape(b, (1, 1, -1))) for (w, b) in params]
    else:
        x_t = x
        params_t = [(w, jnp.reshape(b, (w.shape[0], 1, -1))) for (w, b) in params]
    out = _forward_tasks(x_t, params_t, batch_tile=batch_tile, trim_output=trim_output)
    return out[0] if single_task else out


# ----------------------------------------------------------------------------- reference & init
def init_params(key, input_dim, hidden_dims, output_dim):
    """nn.Linear-style init (uniform +/- 1/sqrt(fan_in)); W stored as [in, out]."""
    dims = [input_dim] + list(hidden_dims) + [output_dim]
    params = []
    for i in range(len(dims) - 1):
        d_in, d_out = dims[i], dims[i + 1]
        key, kw, kb = jax.random.split(key, 3)
        bound = 1.0 / (d_in ** 0.5)
        w = jax.random.uniform(kw, (d_in, d_out), jnp.float32, -bound, bound)
        b = jax.random.uniform(kb, (1, d_out), jnp.float32, -bound, bound)
        params.append((w, b))
    return params


def reference_forward(x, params):
    """Pure-JAX reference with the same bf16-input / f32-accumulate numerics as the kernel."""
    h = x.astype(jnp.bfloat16)
    for i, (w, b) in enumerate(params):
        acc = jnp.dot(h, w.astype(jnp.bfloat16), preferred_element_type=jnp.float32) + b
        if i < len(params) - 1:
            acc = jnp.maximum(acc, 0.0)
            h = acc.astype(jnp.bfloat16)
        else:
            h = acc
    return h


if __name__ == "__main__":
    # Small shapes consistent with the module: MetaLearningModel(32, [64, 64], 16)
    input_dim, hidden_dims, output_dim = 32, [64, 64], 16
    batch = 8

    key = jax.random.PRNGKey(0)
    key, kx = jax.random.split(key)
    x = jax.random.normal(kx, (batch, input_dim), jnp.float32)
    params = init_params(key, input_dim, hidden_dims, output_dim)

    out = jax.block_until_ready(meta_learning_forward(x, params))
    ref = reference_forward(x, params)
    assert out.shape == (batch, output_dim)
    assert jnp.allclose(out, ref, atol=2e-2, rtol=2e-2), "mismatch vs reference (small batch)"

    # Larger ragged batch: exercises balanced batch tiling / 16-sublane padding.
    xb = jax.random.normal(jax.random.PRNGKey(1), (300, input_dim), jnp.float32)
    outb = jax.block_until_ready(meta_learning_forward(xb, params))
    refb = reference_forward(xb, params)
    assert outb.shape == (300, output_dim)
    assert jnp.allclose(outb, refb, atol=2e-2, rtol=2e-2), "mismatch vs reference (large batch)"

    # Task-stacked path: 3 per-task parameter sets evaluated in ONE pallas_call.
    n_tasks = 3
    task_params = [init_params(jax.random.PRNGKey(100 + t), input_dim, hidden_dims, output_dim)
                   for t in range(n_tasks)]
    stacked = [(jnp.stack([task_params[t][l][0] for t in range(n_tasks)]),
                jnp.stack([task_params[t][l][1] for t in range(n_tasks)]))
               for l in range(len(hidden_dims) + 1)]
    xt = jax.random.normal(jax.random.PRNGKey(2), (n_tasks, 40, input_dim), jnp.float32)
    outt = jax.block_until_ready(meta_learning_forward(xt, stacked))
    assert outt.shape == (n_tasks, 40, output_dim)
    for t in range(n_tasks):
        rt = reference_forward(xt[t], task_params[t])
        assert jnp.allclose(outt[t], rt, atol=2e-2, rtol=2e-2), f"mismatch vs reference (task {t})"

    print("KERNEL_OK")
</pallas_src>

<mosaic_0001>
module attributes {stable_mosaic.version = 11 : i64} {
  func.func @_probe(%arg0: i32, %arg1: memref<1x16x128xf32, #tpu.memory_space<vmem>>, %arg2: memref<16x128xf32, #tpu.memory_space<vmem>>) attributes {dimension_semantics = [#tpu.dimension_semantics<arbitrary>], iteration_bounds = array<i64: 1>, scalar_prefetch = 0 : i64, scratch_operands = 0 : i64, tpu.core_type = #tpu.core_type<tc>, window_params = [{pipeline_mode = #tpu.pipeline_mode<synchronous>, transform_indices = @transform_0, window_bounds = array<i64: 1, 16, 128>}, {pipeline_mode = #tpu.pipeline_mode<synchronous>, transform_indices = @transform_1, window_bounds = array<i64: 16, 128>}]} {
    %c0 = arith.constant 0 : index
    %c0_0 = arith.constant 0 : index
    %c0_1 = arith.constant 0 : index
    %0 = vector.load %arg1[%c0, %c0_0, %c0_1] : memref<1x16x128xf32, #tpu.memory_space<vmem>>, vector<1x16x128xf32>
    %1 = vector.shape_cast %0 : vector<1x16x128xf32> to vector<16x128xf32>
    %cst = arith.constant 2.000000e+00 : f32
    %2 = vector.broadcast %cst : f32 to vector<16x128xf32>
    %3 = arith.mulf %1, %2 : vector<16x128xf32>
    %c0_2 = arith.constant 0 : index
    %c0_3 = arith.constant 0 : index
    %4 = vector.load %arg2[%c0_2, %c0_3] : memref<16x128xf32, #tpu.memory_space<vmem>>, vector<16x128xf32>
    tpu.vector_store %arg2[%c0_2, %c0_3], %3 {strides = array<i32>} : memref<16x128xf32, #tpu.memory_space<vmem>>, vector<16x128xf32>,
    return
  }
  func.func @transform_0(%arg0: i32) -> (i32, i32, i32) {
    %c0_i32 = arith.constant 0 : i32
    %c0_i32_0 = arith.constant 0 : i32
    %c0_i32_1 = arith.constant 0 : i32
    %c0_i32_2 = arith.constant 0 : i32
    return %c0_i32, %c0_i32_0, %c0_i32_1 : i32, i32, i32
  }
  func.func @transform_1(%arg0: i32) -> (i32, i32) {
    %c0_i32 = arith.constant 0 : i32
    %c0_i32_0 = arith.constant 0 : i32
    %c0_i32_1 = arith.constant 0 : i32
    return %c0_i32, %c0_i32_0 : i32, i32
  }
}

module attributes {stable_mosaic.version = 11 : i64} {
  func.func @kernel(%arg0: i32, %arg1: i32, %arg2: memref<1x16x128xbf16, #tpu.memory_space<vmem>>, %arg3: memref<1x128x128xbf16, #tpu.memory_space<vmem>>, %arg4: memref<1x1x128xf32, #tpu.memory_space<vmem>>, %arg5: memref<1x128x128xbf16, #tpu.memory_space<vmem>>, %arg6: memref<1x1x128xf32, #tpu.memory_space<vmem>>, %arg7: memref<1x128x128xbf16, #tpu.memory_space<vmem>>, %arg8: memref<1x1x128xf32, #tpu.memory_space<vmem>>, %arg9: memref<1x16x128xf32, #tpu.memory_space<vmem>>) attributes {dimension_semantics = [#tpu.dimension_semantics<parallel>, #tpu.dimension_semantics<parallel>], iteration_bounds = array<i64: 1, 1>, scalar_prefetch = 0 : i64, scratch_operands = 0 : i64, tpu.core_type = #tpu.core_type<tc>, window_params = [{transform_indices = @transform_0, window_bounds = array<i64: 1, 16, 128>}, {transform_indices = @transform_1, window_bounds = array<i64: 1, 128, 128>}, {transform_indices = @transform_2, window_bounds = array<i64: 1, 1, 128>}, {transform_indices = @transform_3, window_bounds = array<i64: 1, 128, 128>}, {transform_indices = @transform_4, window_bounds = array<i64: 1, 1, 128>}, {transform_indices = @transform_5, window_bounds = array<i64: 1, 128, 128>}, {transform_indices = @transform_6, window_bounds = array<i64: 1, 1, 128>}, {transform_indices = @transform_7, window_bounds = array<i64: 1, 16, 128>}]} {
    %c0 = arith.constant 0 : index
    %c0_0 = arith.constant 0 : index
    %c0_1 = arith.constant 0 : index
    %0 = vector.load %arg2[%c0, %c0_0, %c0_1] : memref<1x16x128xbf16, #tpu.memory_space<vmem>>, vector<1x16x128xbf16>
    %1 = vector.shape_cast %0 : vector<1x16x128xbf16> to vector<16x128xbf16>
    %c0_2 = arith.constant 0 : index
    %c0_3 = arith.constant 0 : index
    %c0_4 = arith.constant 0 : index
    %2 = vector.load %arg3[%c0_2, %c0_3, %c0_4] : memref<1x128x128xbf16, #tpu.memory_space<vmem>>, vector<1x128x128xbf16>
    %3 = vector.shape_cast %2 : vector<1x128x128xbf16> to vector<128x128xbf16>
    %c0_5 = arith.constant 0 : index
    %c0_6 = arith.constant 0 : index
    %c0_7 = arith.constant 0 : index
    %4 = vector.load %arg4[%c0_5, %c0_6, %c0_7] : memref<1x1x128xf32, #tpu.memory_space<vmem>>, vector<1x1x128xf32>
    %5 = vector.shape_cast %4 : vector<1x1x128xf32> to vector<1x128xf32>
    %cst = arith.constant dense<0.000000e+00> : vector<16x128xf32>
    %6 = tpu.matmul %1, %3, %cst {dimension_numbers = #tpu.dot_dimension_numbers<[1], [0], [0], [1], [0, 0, 1, 1], [], []>} : vector<16x128xbf16>, vector<128x128xbf16>, vector<16x128xf32> -> vector<16x128xf32>
    %7 = vector.broadcast %5 : vector<1x128xf32> to vector<16x128xf32>
    %8 = arith.addf %6, %7 : vector<16x128xf32>
    %cst_8 = arith.constant 0.000000e+00 : f32
    %9 = vector.broadcast %cst_8 : f32 to vector<16x128xf32>
    %10 = arith.maximumf %8, %9 : vector<16x128xf32>
    %11 = arith.truncf %10 : vector<16x128xf32> to vector<16x128xbf16>
    %c0_9 = arith.constant 0 : index
    %c0_10 = arith.constant 0 : index
    %c0_11 = arith.constant 0 : index
    %12 = vector.load %arg5[%c0_9, %c0_10, %c0_11] : memref<1x128x128xbf16, #tpu.memory_space<vmem>>, vector<1x128x128xbf16>
    %13 = vector.shape_cast %12 : vector<1x128x128xbf16> to vector<128x128xbf16>
    %c0_12 = arith.constant 0 : index
    %c0_13 = arith.constant 0 : index
    %c0_14 = arith.constant 0 : index
    %14 = vector.load %arg6[%c0_12, %c0_13, %c0_14] : memref<1x1x128xf32, #tpu.memory_space<vmem>>, vector<1x1x128xf32>
    %15 = vector.shape_cast %14 : vector<1x1x128xf32> to vector<1x128xf32>
    %cst_15 = arith.constant dense<0.000000e+00> : vector<16x128xf32>
    %16 = tpu.matmul %11, %13, %cst_15 {dimension_numbers = #tpu.dot_dimension_numbers<[1], [0], [0], [1], [0, 0, 1, 1], [], []>} : vector<16x128xbf16>, vector<128x128xbf16>, vector<16x128xf32> -> vector<16x128xf32>
    %17 = vector.broadcast %15 : vector<1x128xf32> to vector<16x128xf32>
    %18 = arith.addf %16, %17 : vector<16x128xf32>
    %cst_16 = arith.constant 0.000000e+00 : f32
    %19 = vector.broadcast %cst_16 : f32 to vector<16x128xf32>
    %20 = arith.maximumf %18, %19 : vector<16x128xf32>
    %21 = arith.truncf %20 : vector<16x128xf32> to vector<16x128xbf16>
    %c0_17 = arith.constant 0 : index
    %c0_18 = arith.constant 0 : index
    %c0_19 = arith.constant 0 : index
    %22 = vector.load %arg7[%c0_17, %c0_18, %c0_19] : memref<1x128x128xbf16, #tpu.memory_space<vmem>>, vector<1x128x128xbf16>
    %23 = vector.shape_cast %22 : vector<1x128x128xbf16> to vector<128x128xbf16>
    %c0_20 = arith.constant 0 : index
    %c0_21 = arith.constant 0 : index
    %c0_22 = arith.constant 0 : index
    %24 = vector.load %arg8[%c0_20, %c0_21, %c0_22] : memref<1x1x128xf32, #tpu.memory_space<vmem>>, vector<1x1x128xf32>
    %25 = vector.shape_cast %24 : vector<1x1x128xf32> to vector<1x128xf32>
    %cst_23 = arith.constant dense<0.000000e+00> : vector<16x128xf32>
    %26 = tpu.matmul %21, %23, %cst_23 {dimension_numbers = #tpu.dot_dimension_numbers<[1], [0], [0], [1], [0, 0, 1, 1], [], []>} : vector<16x128xbf16>, vector<128x128xbf16>, vector<16x128xf32> -> vector<16x128xf32>
    %27 = vector.broadcast %25 : vector<1x128xf32> to vector<16x128xf32>
    %28 = arith.addf %26, %27 : vector<16x128xf32>
    %c0_24 = arith.constant 0 : index
    %c0_25 = arith.constant 0 : index
    %c0_26 = arith.constant 0 : index
    %29 = vector.load %arg9[%c0_24, %c0_25, %c0_26] : memref<1x16x128xf32, #tpu.memory_space<vmem>>, vector<1x16x128xf32>
    %30 = vector.shape_cast %29 : vector<1x16x128xf32> to vector<16x128xf32>
    %31 = vector.shape_cast %28 : vector<16x128xf32> to vector<1x16x128xf32>
    tpu.vector_store %arg9[%c0_24, %c0_25, %c0_26], %31 {strides = array<i32>} : memref<1x16x128xf32, #tpu.memory_space<vmem>>, vector<1x16x128xf32>,
    return
  }
  func.func @transform_0(%arg0: i32, %arg1: i32) -> (i32, i32, i32) {
    %c0_i32 = arith.constant 0 : i32
    %c0_i32_0 = arith.constant 0 : i32
    return %arg0, %arg1, %c0_i32 : i32, i32, i32
  }
  func.func @transform_1(%arg0: i32, %arg1: i32) -> (i32, i32, i32) {
    %c0_i32 = arith.constant 0 : i32
    %c0_i32_0 = arith.constant 0 : i32
    %c0_i32_1 = arith.constant 0 : i32
    return %arg0, %c0_i32, %c0_i32_0 : i32, i32, i32
  }
  func.func @transform_2(%arg0: i32, %arg1: i32) -> (i32, i32, i32) {
    %c0_i32 = arith.constant 0 : i32
    %c0_i32_0 = arith.constant 0 : i32
    %c0_i32_1 = arith.constant 0 : i32
    return %arg0, %c0_i32, %c0_i32_0 : i32, i32, i32
  }
  func.func @transform_3(%arg0: i32, %arg1: i32) -> (i32, i32, i32) {
    %c0_i32 = arith.constant 0 : i32
    %c0_i32_0 = arith.constant 0 : i32
    %c0_i32_1 = arith.constant 0 : i32
    return %arg0, %c0_i32, %c0_i32_0 : i32, i32, i32
  }
  func.func @transform_4(%arg0: i32, %arg1: i32) -> (i32, i32, i32) {
    %c0_i32 = arith.constant 0 : i32
    %c0_i32_0 = arith.constant 0 : i32
    %c0_i32_1 = arith.constant 0 : i32
    return %arg0, %c0_i32, %c0_i32_0 : i32, i32, i32
  }
  func.func @transform_5(%arg0: i32, %arg1: i32) -> (i32, i32, i32) {
    %c0_i32 = arith.constant 0 : i32
    %c0_i32_0 = arith.constant 0 : i32
    %c0_i32_1 = arith.constant 0 : i32
    return %arg0, %c0_i32, %c0_i32_0 : i32, i32, i32
  }
  func.func @transform_6(%arg0: i32, %arg1: i32) -> (i32, i32, i32) {
    %c0_i32 = arith.constant 0 : i32
    %c0_i32_0 = arith.constant 0 : i32
    %c0_i32_1 = arith.constant 0 : i32
    return %arg0, %c0_i32, %c0_i32_0 : i32, i32, i32
  }
  func.func @transform_7(%arg0: i32, %arg1: i32) -> (i32, i32, i32) {
    %c0_i32 = arith.constant 0 : i32
    %c0_i32_0 = arith.constant 0 : i32
    return %arg0, %arg1, %c0_i32 : i32, i32, i32
  }
}

</mosaic_0001>

<llo_original>
// kernel: tpu_custom_call.1
$region0: #{tpu_custom_call.1}
  #allocation0 [shape = 'u32[]', space=smem, size = 0x4, offset = 0x4, fixed_abs, tag = 'smem constant byte address 0x4 - core index']
  #allocation1 [shape = 'u32[144,128]{1,0:T(1,128)}', space=vmem, size = 0x12000, scoped, tag = 'internal scratch']
  %s0 = inlined_call_operand.hbm [shape: f32[1,16,128], index: 0, kind: input, shape index: {}]
  %s1 = inlined_call_operand.hbm [shape: f32[16,128], index: 1, kind: output, shape index: {}]
  %s2 = sld [smem:[#allocation0]]
  $region18: #{tpu_custom_call.1} parent=0
    _
  %s4 = ssub.s32 1, %s2
  %s5 = scalar_select 0, %s4, %s2
  $region1: #{tpu_custom_call.1} parent=0
    #allocation2 [shape = 'u8[8192]{0}', space=vmem, size = 0x2000, scoped, tag = 'input window, operand 0, single buffered']
    #allocation3 [shape = 's32[1]{0}', space=sflag, size = 0x4, scoped, tag = 'scoped memory for tpu_custom_call.1']
    #allocation4 [shape = 's32[1]{0}', space=sflag, size = 0x4, scoped, tag = 'scoped memory for tpu_custom_call.1']
    #allocation5 [shape = 'u8[8192]{0}', space=vmem, size = 0x2000, scoped, tag = 'output window, operand 0, single buffered']
    %6 = vsyncpa [#allocation3], 0
    %7 = vsyncpa [#allocation4], 0
    // Predicated region
    $region2: #{tpu_custom_call.1} parent=1 // pred_check
      _
    $region3: #{tpu_custom_call.1} parent=1 // pred_check_branch
      %9 = sbr.rel (0) target = $region5
    $region4: #{tpu_custom_call.1} parent=1 // pred_region
      %s11 = ssub.s32 256, 256
      %12 = vsyncadd [#allocation3], %s11
      %s13 = sshll.u32 [#allocation2], 4
      %s14 = int_to_ptr.vmem [resolvable:$true] %s13
      %19 = dma.hbm_to_vmem [thread:$0]  %s0, 256, %s14, [#allocation3], 128, 128, 8
    $region5: #{tpu_custom_call.1} parent=1 // pred_fallthru
      _
    // Predicated region
    $region6: #{tpu_custom_call.1} parent=1 // pred_check
      _
    $region7: #{tpu_custom_call.1} parent=1 // pred_check_branch
      %21 = sbr.rel (0) target = $region9
    $region8: #{tpu_custom_call.1} parent=1 // pred_region
      %22 = dma.done [#allocation3], 256
    $region9: #{tpu_custom_call.1} parent=1 // pred_fallthru
      _
    %v23 = vld [vmem:[#allocation2] sm:$0xff]
    %v24 = vld [vmem:[#allocation2 + $0x8] sm:$0xff]
    %v25 = vmul.f32 %v23, 2.0
    %v26 = vmul.f32 %v24, 2.0
    %27 = vst [vmem:[#allocation5] sm:$0xff] %v25
    %28 = vst [vmem:[#allocation5 + $0x8] sm:$0xff] %v26
    // Predicated region
    $region10: #{tpu_custom_call.1} parent=1 // pred_check
      _
    $region11: #{tpu_custom_call.1} parent=1 // pred_check_branch
      %30 = sbr.rel (0) target = $region13
    $region12: #{tpu_custom_call.1} parent=1 // pred_region
      %s32 = ssub.s32 256, 256
      %33 = vsyncadd [#allocation4], %s32
      %s34 = sshll.u32 [#allocation5], 4
      %s35 = int_to_ptr.vmem [resolvable:$true] %s34
      %40 = dma.vmem_to_hbm [thread:$0]  %s35, 256, %s1, [#allocation4], 128, 128, 8
    $region13: #{tpu_custom_call.1} parent=1 // pred_fallthru
      _
    // Predicated region
    $region14: #{tpu_custom_call.1} parent=1 // pred_check
      _
    $region15: #{tpu_custom_call.1} parent=1 // pred_check_branch
      %42 = sbr.rel (0) target = $region17
    $region16: #{tpu_custom_call.1} parent=1 // pred_region
      %43 = dma.done [#allocation4], 256
    $region17: #{tpu_custom_call.1} parent=1 // pred_fallthru
      _
    %44 = vsyncpa [#allocation3], 1
    %45 = vsyncpa [#allocation4], 1

// kernel: tpu_custom_call.1
$region0: #{tpu_custom_call.1}
  #allocation0 [shape = 'u32[]', space=smem, size = 0x4, offset = 0x4, fixed_abs, tag = 'smem constant byte address 0x4 - core index']
  #allocation1 [shape = 'u32[144,128]{1,0:T(1,128)}', space=vmem, size = 0x12000, scoped, tag = 'internal scratch']
  %s0 = inlined_call_operand.hbm [shape: bf16[1,16,128], index: 0, kind: input, shape index: {}]
  %s1 = inlined_call_operand.hbm [shape: bf16[1,128,128], index: 1, kind: input, shape index: {}]
  %s2 = inlined_call_operand.vmem [shape: f32[1,1,128], index: 2, kind: input, shape index: {}]
  %s3 = inlined_call_operand.hbm [shape: bf16[1,128,128], index: 3, kind: input, shape index: {}]
  %s4 = inlined_call_operand.vmem [shape: f32[1,1,128], index: 4, kind: input, shape index: {}]
  %s5 = inlined_call_operand.hbm [shape: bf16[1,128,128], index: 5, kind: input, shape index: {}]
  %s6 = inlined_call_operand.vmem [shape: f32[1,1,128], index: 6, kind: input, shape index: {}]
  %s7 = inlined_call_operand.hbm [shape: f32[1,16,128], index: 7, kind: output, shape index: {}]
  %s8 = sld [smem:[#allocation0]]
  $region54: #{tpu_custom_call.1} parent=0
    _
  %s10 = ssub.s32 1, %s8
  %s11 = scalar_select 0, %s10, %s8
  $region1: #{tpu_custom_call.1} parent=0
    #allocation2 [shape = 'u8[4096]{0}', space=vmem, size = 0x1000, scoped, tag = 'input window, operand 0, single buffered']
    #allocation3 [shape = 's32[1]{0}', space=sflag, size = 0x4, scoped, tag = 'scoped memory for tpu_custom_call.1']
    #allocation4 [shape = 's32[1]{0}', space=sflag, size = 0x4, scoped, tag = 'scoped memory for tpu_custom_call.1']
    #allocation5 [shape = 'u8[32768]{0}', space=vmem, size = 0x8000, scoped, tag = 'input window, operand 1, single buffered']
    #allocation6 [shape = 's32[1]{0}', space=sflag, size = 0x4, scoped, tag = 'scoped memory for tpu_custom_call.1']
    #allocation7 [shape = 'u8[32768]{0}', space=vmem, size = 0x8000, scoped, tag = 'input window, operand 3, single buffered']
    #allocation8 [shape = 'u8[32768]{0}', space=vmem, size = 0x8000, scoped, tag = 'input window, operand 5, single buffered']
    #allocation9 [shape = 's32[1]{0}', space=sflag, size = 0x4, scoped, tag = 'scoped memory for tpu_custom_call.1']
    #allocation10 [shape = 'u8[8192]{0}', space=vmem, size = 0x2000, scoped, tag = 'output window, operand 0, single buffered']
    %12 = vsyncpa [#allocation3], 0
    %13 = vsyncpa [#allocation6], 0
    %14 = vsyncpa [#allocation9], 0
    %15 = vsyncpa [#allocation4], 0
    // Predicated region
    $region2: #{tpu_custom_call.1} parent=1 // pred_check
      _
    $region3: #{tpu_custom_call.1} parent=1 // pred_check_branch
      %17 = sbr.rel (0) target = $region5
    $region4: #{tpu_custom_call.1} parent=1 // pred_region
      %s19 = ssub.s32 128, 128
      %20 = vsyncadd [#allocation3], %s19
      %s21 = sshll.u32 [#allocation2], 4
      %s22 = int_to_ptr.vmem [resolvable:$true] %s21
      %27 = dma.hbm_to_vmem [thread:$0]  %s0, 128, %s22, [#allocation3], 64, 64, 4
    $region5: #{tpu_custom_call.1} parent=1 // pred_fallthru
      _
    // Predicated region
    $region6: #{tpu_custom_call.1} parent=1 // pred_check
      _
    $region7: #{tpu_custom_call.1} parent=1 // pred_check_branch
      %29 = sbr.rel (0) target = $region9
    $region8: #{tpu_custom_call.1} parent=1 // pred_region
      %s31 = ssub.s32 1024, 1024
      %32 = vsyncadd [#allocation6], %s31
      %s33 = sshll.u32 [#allocation5], 4
      %s34 = int_to_ptr.vmem [resolvable:$true] %s33
      %39 = dma.hbm_to_vmem [thread:$0]  %s1, 1024, %s34, [#allocation6], 64, 64, 4
    $region9: #{tpu_custom_call.1} parent=1 // pred_fallthru
      _
    // Predicated region
    $region10: #{tpu_custom_call.1} parent=1 // pred_check
      _
    $region11: #{tpu_custom_call.1} parent=1 // pred_check_branch
      %41 = sbr.rel (0) target = $region13
    $region12: #{tpu_custom_call.1} parent=1 // pred_region
      _
    $region13: #{tpu_custom_call.1} parent=1 // pred_fallthru
      _
    // Predicated region
    $region14: #{tpu_custom_call.1} parent=1 // pred_check
      _
    $region15: #{tpu_custom_call.1} parent=1 // pred_check_branch
      %43 = sbr.rel (0) target = $region17
    $region16: #{tpu_custom_call.1} parent=1 // pred_region
      %s45 = ssub.s32 1024, 1024
      %46 = vsyncadd [#allocation6], %s45
      %s47 = sshll.u32 [#allocation7], 4
      %s48 = int_to_ptr.vmem [resolvable:$true] %s47
      %53 = dma.hbm_to_vmem [thread:$0]  %s3, 1024, %s48, [#allocation6], 64, 64, 4
    $region17: #{tpu_custom_call.1} parent=1 // pred_fallthru
      _
    // Predicated region
    $region18: #{tpu_custom_call.1} parent=1 // pred_check
      _
    $region19: #{tpu_custom_call.1} parent=1 // pred_check_branch
      %55 = sbr.rel (0) target = $region21
    $region20: #{tpu_custom_call.1} parent=1 // pred_region
      _
    $region21: #{tpu_custom_call.1} parent=1 // pred_fallthru
      _
    // Predicated region
    $region22: #{tpu_custom_call.1} parent=1 // pred_check
      _
    $region23: #{tpu_custom_call.1} parent=1 // pred_check_branch
      %57 = sbr.rel (0) target = $region25
    $region24: #{tpu_custom_call.1} parent=1 // pred_region
      %s59 = ssub.s32 1024, 1024
      %60 = vsyncadd [#allocation9], %s59
      %s61 = sshll.u32 [#allocation8], 4
      %s62 = int_to_ptr.vmem [resolvable:$true] %s61
      %67 = dma.hbm_to_vmem [thread:$0]  %s5, 1024, %s62, [#allocation9], 64, 64, 4
    $region25: #{tpu_custom_call.1} parent=1 // pred_fallthru
      _
    // Predicated region
    $region26: #{tpu_custom_call.1} parent=1 // pred_check
      _
    $region27: #{tpu_custom_call.1} parent=1 // pred_check_branch
      %69 = sbr.rel (0) target = $region29
    $region28: #{tpu_custom_call.1} parent=1 // pred_region
      _
    $region29: #{tpu_custom_call.1} parent=1 // pred_fallthru
      _
    // Predicated region
    $region30: #{tpu_custom_call.1} parent=1 // pred_check
      _
    $region31: #{tpu_custom_call.1} parent=1 // pred_check_branch
      %71 = sbr.rel (0) target = $region33
    $region32: #{tpu_custom_call.1} parent=1 // pred_region
      %72 = dma.done [#allocation3], 128
    $region33: #{tpu_custom_call.1} parent=1 // pred_fallthru
      _
    // Predicated region
    $region34: #{tpu_custom_call.1} parent=1 // pred_check
      _
    $region35: #{tpu_custom_call.1} parent=1 // pred_check_branch
      %74 = sbr.rel (0) target = $region37
    $region36: #{tpu_custom_call.1} parent=1 // pred_region
      %75 = dma.done [#allocation6], 1024
    $region37: #{tpu_custom_call.1} parent=1 // pred_fallthru
      _
    // Predicated region
    $region38: #{tpu_custom_call.1} parent=1 // pred_check
      _
    $region39: #{tpu_custom_call.1} parent=1 // pred_check_branch
      %77 = sbr.rel (0) target = $region41
    $region40: #{tpu_custom_call.1} parent=1 // pred_region
      %78 = dma.done [#allocation6], 1024
    $region41: #{tpu_custom_call.1} parent=1 // pred_fallthru
      _
    // Predicated region
    $region42: #{tpu_custom_call.1} parent=1 // pred_check
      _
    $region43: #{tpu_custom_call.1} parent=1 // pred_check_branch
      %80 = sbr.rel (0) target = $region45
    $region44: #{tpu_custom_call.1} parent=1 // pred_region
      %81 = dma.done [#allocation9], 1024
    $region45: #{tpu_custom_call.1} parent=1 // pred_fallthru
      _
    %v83 = vld [vmem:[#allocation2] sm:$0xf]
    %v84 = vld [vmem:[#allocation2 + $0x4] sm:$0xf]
    %v85 = vld [vmem:[#allocation5] sm:$0xf]
    %v86 = vld [vmem:[#allocation5 + $0x4] sm:$0xf]
    %v87 = vld [vmem:[#allocation5 + $0x8] sm:$0xf]
    %v88 = vld [vmem:[#allocation5 + $0xc] sm:$0xf]
    %v89 = vld [vmem:[#allocation5 + $0x10] sm:$0xf]
    %v90 = vld [vmem:[#allocation5 + $0x14] sm:$0xf]
    %v91 = vld [vmem:[#allocation5 + $0x18] sm:$0xf]
    %v92 = vld [vmem:[#allocation5 + $0x1c] sm:$0xf]
    %v93 = vld [vmem:[#allocation5 + $0x20] sm:$0xf]
    %v94 = vld [vmem:[#allocation5 + $0x24] sm:$0xf]
    %v95 = vld [vmem:[#allocation5 + $0x28] sm:$0xf]
    %v96 = vld [vmem:[#allocation5 + $0x2c] sm:$0xf]
    %v97 = vld [vmem:[#allocation5 + $0x30] sm:$0xf]
    %v98 = vld [vmem:[#allocation5 + $0x34] sm:$0xf]
    %v99 = vld [vmem:[#allocation5 + $0x38] sm:$0xf]
    %v100 = vld [vmem:[#allocation5 + $0x3c] sm:$0xf]
    %v101 = vld [vmem:[%s2] sm:$0x1]
    %v103 = vlaneseq
    %v104 = vshrl.u32 %v103, 7
    %v105 = vsub.s32 0, %v104
    %v106 = vrot.slane %v101, %v105
    %v110 = vunpack.c.l.b16 %v83
    %v111 = vunpack.c.l.b16 %v84
    %v112 = vpack.c.b16 %v111, %v110
    %v130 = vunpack.c.l.b16 %v85
    %v131 = vunpack.c.l.b16 %v86
    %v132 = vunpack.c.l.b16 %v87
    %v133 = vunpack.c.l.b16 %v88
    %v134 = vunpack.c.l.b16 %v89
    %v135 = vunpack.c.l.b16 %v90
    %v136 = vunpack.c.l.b16 %v91
    %v137 = vunpack.c.l.b16 %v92
    %v138 = vunpack.c.l.b16 %v93
    %v139 = vunpack.c.l.b16 %v94
    %v140 = vunpack.c.l.b16 %v95
    %v141 = vunpack.c.l.b16 %v96
    %v142 = vunpack.c.l.b16 %v97
    %v143 = vunpack.c.l.b16 %v98
    %v144 = vunpack.c.l.b16 %v99
    %v145 = vunpack.c.l.b16 %v100
    %v146 = vpack.c.b16 %v131, %v130
    %v147 = vpack.c.b16 %v133, %v132
    %v148 = vpack.c.b16 %v135, %v134
    %v149 = vpack.c.b16 %v137, %v136
    %v150 = vpack.c.b16 %v139, %v138
    %v151 = vpack.c.b16 %v141, %v140
    %v152 = vpack.c.b16 %v143, %v142
    %v153 = vpack.c.b16 %v145, %v144
    %162 = vmatprep.subr.bf16.mxu0 0
    %163 = vmatpush1.bf16.msra.mxu0 %v146
    %164 = vmatprep.subr.bf16.mxu0 0
    %165 = vmatpush1.bf16.msra.mxu0 %v147
    %166 = vmatprep.subr.bf16.mxu0 0
    %167 = vmatpush1.bf16.msra.mxu0 %v148
    %168 = vmatprep.subr.bf16.mxu0 0
    %169 = vmatpush1.bf16.msra.mxu0 %v149
    %170 = vmatprep.subr.bf16.mxu0 0
    %171 = vmatpush1.bf16.msra.mxu0 %v150
    %172 = vmatprep.subr.bf16.mxu0 0
    %173 = vmatpush1.bf16.msra.mxu0 %v151
    %174 = vmatprep.subr.bf16.mxu0 0
    %175 = vmatpush1.bf16.msra.mxu0 %v152
    %176 = vmatprep.subr.bf16.mxu0 0
    %177 = vmatpush1.bf16.msra.mxu0 %v153
    %178 = vmatprep.subr.bf16.mxu0 0
    %179 = vmatpush1.bf16.msra.mxu0 0
    %180 = vmatprep.subr.bf16.mxu0 0
    %181 = vmatpush1.bf16.msra.mxu0 0
    %182 = vmatprep.subr.bf16.mxu0 0
    %183 = vmatpush1.bf16.msra.mxu0 0
    %184 = vmatprep.subr.bf16.mxu0 0
    %185 = vmatpush1.bf16.msra.mxu0 0
    %186 = vmatprep.subr.bf16.mxu0 0
    %187 = vmatpush1.bf16.msra.mxu0 0
    %188 = vmatprep.subr.bf16.mxu0 0
    %189 = vmatpush1.bf16.msra.mxu0 0
    %190 = vmatprep.subr.bf16.mxu0 0
    %191 = vmatpush1.bf16.msra.mxu0 0
    %192 = vmatprep.subr.bf16.mxu0 0
    %193 = vmatpush1.bf16.msra.mxu0 0
    %194 = vmatprep.mubr.bf16.mxu0 0
    %195 = vmatmul.mubr.bf16.gmra.mrb[0].mxu0 %v112
    %v196 = vpop.f32.mrb[0].mxu0
    %v197 = vadd.f32 %v106, %v196
    %v198 = vpop.f32.mrb[0].mxu0
    %v199 = vpop.f32.mrb[0].mxu0
    %v200 = vadd.f32 %v106, %v199
    %v201 = vpop.f32.mrb[0].mxu0
    %202 = vdwg.mxu0
    %v203 = vmax.f32 %v197, 0.0
    %v204 = vmax.f32 %v200, 0.0
    %v205 = vpack.c.bf16 %v204, %v203
    %v206 = vld [vmem:[#allocation7] sm:$0xf]
    %v207 = vld [vmem:[#allocation7 + $0x4] sm:$0xf]
    %v208 = vld [vmem:[#allocation7 + $0x8] sm:$0xf]
    %v209 = vld [vmem:[#allocation7 + $0xc] sm:$0xf]
    %v210 = vld [vmem:[#allocation7 + $0x10] sm:$0xf]
    %v211 = vld [vmem:[#allocation7 + $0x14] sm:$0xf]
    %v212 = vld [vmem:[#allocation7 + $0x18] sm:$0xf]
    %v213 = vld [vmem:[#allocation7 + $0x1c] sm:$0xf]
    %v214 = vld [vmem:[#allocation7 + $0x20] sm:$0xf]
    %v215 = vld [vmem:[#allocation7 + $0x24] sm:$0xf]
    %v216 = vld [vmem:[#allocation7 + $0x28] sm:$0xf]
    %v217 = vld [vmem:[#allocation7 + $0x2c] sm:$0xf]
    %v218 = vld [vmem:[#allocation7 + $0x30] sm:$0xf]
    %v219 = vld [vmem:[#allocation7 + $0x34] sm:$0xf]
    %v220 = vld [vmem:[#allocation7 + $0x38] sm:$0xf]
    %v221 = vld [vmem:[#allocation7 + $0x3c] sm:$0xf]
    %v222 = vld [vmem:[%s4] sm:$0x1]
    %v224 = vlaneseq
    %v225 = vshrl.u32 %v224, 7
    %v226 = vsub.s32 0, %v225
    %v227 = vrot.slane %v222, %v226
    %v245 = vunpack.c.l.b16 %v206
    %v246 = vunpack.c.l.b16 %v207
    %v247 = vunpack.c.l.b16 %v208
    %v248 = vunpack.c.l.b16 %v209
    %v249 = vunpack.c.l.b16 %v210
    %v250 = vunpack.c.l.b16 %v211
    %v251 = vunpack.c.l.b16 %v212
    %v252 = vunpack.c.l.b16 %v213
    %v253 = vunpack.c.l.b16 %v214
    %v254 = vunpack.c.l.b16 %v215
    %v255 = vunpack.c.l.b16 %v216
    %v256 = vunpack.c.l.b16 %v217
    %v257 = vunpack.c.l.b16 %v218
    %v258 = vunpack.c.l.b16 %v219
    %v259 = vunpack.c.l.b16 %v220
    %v260 = vunpack.c.l.b16 %v221
    %v261 = vpack.c.b16 %v246, %v245
    %v262 = vpack.c.b16 %v248, %v247
    %v263 = vpack.c.b16 %v250, %v249
    %v264 = vpack.c.b16 %v252, %v251
    %v265 = vpack.c.b16 %v254, %v253
    %v266 = vpack.c.b16 %v256, %v255
    %v267 = vpack.c.b16 %v258, %v257
    %v268 = vpack.c.b16 %v260, %v259
    %277 = vmatprep.subr.bf16.mxu0 0
    %278 = vmatpush1.bf16.msra.mxu0 %v261
    %279 = vmatprep.subr.bf16.mxu0 0
    %280 = vmatpush1.bf16.msra.mxu0 %v262
    %281 = vmatprep.subr.bf16.mxu0 0
    %282 = vmatpush1.bf16.msra.mxu0 %v263
    %283 = vmatprep.subr.bf16.mxu0 0
    %284 = vmatpush1.bf16.msra.mxu0 %v264
    %285 = vmatprep.subr.bf16.mxu0 0
    %286 = vmatpush1.bf16.msra.mxu0 %v265
    %287 = vmatprep.subr.bf16.mxu0 0
    %288 = vmatpush1.bf16.msra.mxu0 %v266
    %289 = vmatprep.subr.bf16.mxu0 0
    %290 = vmatpush1.bf16.msra.mxu0 %v267
    %291 = vmatprep.subr.bf16.mxu0 0
    %292 = vmatpush1.bf16.msra.mxu0 %v268
    %293 = vmatprep.subr.bf16.mxu0 0
    %294 = vmatpush1.bf16.msra.mxu0 0
    %295 = vmatprep.subr.bf16.mxu0 0
    %296 = vmatpush1.bf16.msra.mxu0 0
    %297 = vmatprep.subr.bf16.mxu0 0
    %298 = vmatpush1.bf16.msra.mxu0 0
    %299 = vmatprep.subr.bf16.mxu0 0
    %300 = vmatpush1.bf16.msra.mxu0 0
    %301 = vmatprep.subr.bf16.mxu0 0
    %302 = vmatpush1.bf16.msra.mxu0 0
    %303 = vmatprep.subr.bf16.mxu0 0
    %304 = vmatpush1.bf16.msra.mxu0 0
    %305 = vmatprep.subr.bf16.mxu0 0
    %306 = vmatpush1.bf16.msra.mxu0 0
    %307 = vmatprep.subr.bf16.mxu0 0
    %308 = vmatpush1.bf16.msra.mxu0 0
    %309 = vmatprep.mubr.bf16.mxu0 0
    %310 = vmatmul.mubr.bf16.gmra.mrb[0].mxu0 %v205
    %v311 = vpop.f32.mrb[0].mxu0
    %v312 = vadd.f32 %v227, %v311
    %v313 = vpop.f32.mrb[0].mxu0
    %v314 = vpop.f32.mrb[0].mxu0
    %v315 = vadd.f32 %v227, %v314
    %v316 = vpop.f32.mrb[0].mxu0
    %317 = vdwg.mxu0
    %v318 = vmax.f32 %v312, 0.0
    %v319 = vmax.f32 %v315, 0.0
    %v320 = vpack.c.bf16 %v319, %v318
    %v321 = vld [vmem:[#allocation8] sm:$0xf]
    %v322 = vld [vmem:[#allocation8 + $0x4] sm:$0xf]
    %v323 = vld [vmem:[#allocation8 + $0x8] sm:$0xf]
    %v324 = vld [vmem:[#allocation8 + $0xc] sm:$0xf]
    %v325 = vld [vmem:[#allocation8 + $0x10] sm:$0xf]
    %v326 = vld [vmem:[#allocation8 + $0x14] sm:$0xf]
    %v327 = vld [vmem:[#allocation8 + $0x18] sm:$0xf]
    %v328 = vld [vmem:[#allocation8 + $0x1c] sm:$0xf]
    %v329 = vld [vmem:[#allocation8 + $0x20] sm:$0xf]
    %v330 = vld [vmem:[#allocation8 + $0x24] sm:$0xf]
    %v331 = vld [vmem:[#allocation8 + $0x28] sm:$0xf]
    %v332 = vld [vmem:[#allocation8 + $0x2c] sm:$0xf]
    %v333 = vld [vmem:[#allocation8 + $0x30] sm:$0xf]
    %v334 = vld [vmem:[#allocation8 + $0x34] sm:$0xf]
    %v335 = vld [vmem:[#allocation8 + $0x38] sm:$0xf]
    %v336 = vld [vmem:[#allocation8 + $0x3c] sm:$0xf]
    %v337 = vld [vmem:[%s6] sm:$0x1]
    %v339 = vlaneseq
    %v340 = vshrl.u32 %v339, 7
    %v341 = vsub.s32 0, %v340
    %v342 = vrot.slane %v337, %v341
    %v360 = vunpack.c.l.b16 %v321
    %v361 = vunpack.c.l.b16 %v322
    %v362 = vunpack.c.l.b16 %v323
    %v363 = vunpack.c.l.b16 %v324
    %v364 = vunpack.c.l.b16 %v325
    %v365 = vunpack.c.l.b16 %v326
    %v366 = vunpack.c.l.b16 %v327
    %v367 = vunpack.c.l.b16 %v328
    %v368 = vunpack.c.l.b16 %v329
    %v369 = vunpack.c.l.b16 %v330
    %v370 = vunpack.c.l.b16 %v331
    %v371 = vunpack.c.l.b16 %v332
    %v372 = vunpack.c.l.b16 %v333
    %v373 = vunpack.c.l.b16 %v334
    %v374 = vunpack.c.l.b16 %v335
    %v375 = vunpack.c.l.b16 %v336
    %v376 = vpack.c.b16 %v361, %v360
    %v377 = vpack.c.b16 %v363, %v362
    %v378 = vpack.c.b16 %v365, %v364
    %v379 = vpack.c.b16 %v367, %v366
    %v380 = vpack.c.b16 %v369, %v368
    %v381 = vpack.c.b16 %v371, %v370
    %v382 = vpack.c.b16 %v373, %v372
    %v383 = vpack.c.b16 %v375, %v374
    %392 = vmatprep.subr.bf16.mxu0 0
    %393 = vmatpush1.bf16.msra.mxu0 %v376
    %394 = vmatprep.subr.bf16.mxu0 0
    %395 = vmatpush1.bf16.msra.mxu0 %v377
    %396 = vmatprep.subr.bf16.mxu0 0
    %397 = vmatpush1.bf16.msra.mxu0 %v378
    %398 = vmatprep.subr.bf16.mxu0 0
    %399 = vmatpush1.bf16.msra.mxu0 %v379
    %400 = vmatprep.subr.bf16.mxu0 0
    %401 = vmatpush1.bf16.msra.mxu0 %v380
    %402 = vmatprep.subr.bf16.mxu0 0
    %403 = vmatpush1.bf16.msra.mxu0 %v381
    %404 = vmatprep.subr.bf16.mxu0 0
    %405 = vmatpush1.bf16.msra.mxu0 %v382
    %406 = vmatprep.subr.bf16.mxu0 0
    %407 = vmatpush1.bf16.msra.mxu0 %v383
    %408 = vmatprep.subr.bf16.mxu0 0
    %409 = vmatpush1.bf16.msra.mxu0 0
    %410 = vmatprep.subr.bf16.mxu0 0
    %411 = vmatpush1.bf16.msra.mxu0 0
    %412 = vmatprep.subr.bf16.mxu0 0
    %413 = vmatpush1.bf16.msra.mxu0 0
    %414 = vmatprep.subr.bf16.mxu0 0
    %415 = vmatpush1.bf16.msra.mxu0 0
    %416 = vmatprep.subr.bf16.mxu0 0
    %417 = vmatpush1.bf16.msra.mxu0 0
    %418 = vmatprep.subr.bf16.mxu0 0
    %419 = vmatpush1.bf16.msra.mxu0 0
    %420 = vmatprep.subr.bf16.mxu0 0
    %421 = vmatpush1.bf16.msra.mxu0 0
    %422 = vmatprep.subr.bf16.mxu0 0
    %423 = vmatpush1.bf16.msra.mxu0 0
    %424 = vmatprep.mubr.bf16.mxu0 0
    %425 = vmatmul.mubr.bf16.gmra.mrb[0].mxu0 %v320
    %v426 = vpop.f32.mrb[0].mxu0
    %v427 = vadd.f32 %v342, %v426
    %v428 = vpop.f32.mrb[0].mxu0
    %v429 = vpop.f32.mrb[0].mxu0
    %v430 = vadd.f32 %v342, %v429
    %v431 = vpop.f32.mrb[0].mxu0
    %432 = vdwg.mxu0
    %433 = vst [vmem:[#allocation10] sm:$0xff] %v427
    %434 = vst [vmem:[#allocation10 + $0x8] sm:$0xff] %v430
    // Predicated region
    $region46: #{tpu_custom_call.1} parent=1 // pred_check
      _
    $region47: #{tpu_custom_call.1} parent=1 // pred_check_branch
      %436 = sbr.rel (0) target = $region49
    $region48: #{tpu_custom_call.1} parent=1 // pred_region
      %s438 = ssub.s32 256, 256
      %439 = vsyncadd [#allocation4], %s438
      %s440 = sshll.u32 [#allocation10], 4
      %s441 = int_to_ptr.vmem [resolvable:$true] %s440
      %446 = dma.vmem_to_hbm [thread:$0]  %s441, 256, %s7, [#allocation4], 128, 128, 8
    $region49: #{tpu_custom_call.1} parent=1 // pred_fallthru
      _
    // Predicated region
    $region50: #{tpu_custom_call.1} parent=1 // pred_check
      _
    $region51: #{tpu_custom_call.1} parent=1 // pred_check_branch
      %448 = sbr.rel (0) target = $region53
    $region52: #{tpu_custom_call.1} parent=1 // pred_region
      %449 = dma.done [#allocation4], 256
    $region53: #{tpu_custom_call.1} parent=1 // pred_fallthru
      _
    %450 = vsyncpa [#allocation3], 1
    %451 = vsyncpa [#allocation6], 1
    %452 = vsyncpa [#allocation9], 1
    %453 = vsyncpa [#allocation4], 1

</llo_original>
